<compile_context>
chip_gen: v5e
topology: v5e:2x2
jax: 0.10.0
libtpu: 0.0.40
codegen_flags: <defaults>
</compile_context>

<pallas_src>
import functools

import jax
import jax.numpy as jnp
from jax import lax
from jax.experimental import pallas as pl
from jax.experimental.pallas import tpu as pltpu


def _conv_bn_lrelu(slab_ref, tap_ref, bias_ref, gam_ref, bet_ref, e_ref, et_ref,
                   *, n, hp, wp, eps=1e-5, slope=0.1):
    """Conv3x3(pad=1) + BatchNorm2d(batch stats) + LeakyReLU(0.1) on a row-slab.

    slab_ref : (N, Hp+2, (Wp+2)*Ci)   zero-halo padded input (lanes = x-major, c-minor)
    tap_ref  : (3, (Wp+2)*Ci, (Wp+2)*Co) structured weights; B[dy] folds the 3 dx taps
    bias/gam/bet : (1, (Wp+2)*Co)     lane-expanded params, zero on the halo column blocks
    e_ref/et_ref : (Co, (Wp+2)*Co)    channel<->lane scatter matrix and its transpose
    returns  : (N*Hp, (Wp+2)*Co) activations; halo column blocks stay exactly zero,
               so the result is directly the interior of the next stage's padded slab.
    """
    kdim = slab_ref.shape[-1]

    # 3x3 conv as 3 row-tap matmuls: K = (Wp+2)*Ci, lane-dense (Wp+2)*Co output.
    acc = None
    for dy in range(3):
        rows = slab_ref[:, dy:dy + hp, :].reshape(n * hp, kdim)
        part = jnp.dot(rows, tap_ref[dy], preferred_element_type=jnp.float32)
        acc = part if acc is None else acc + part
    acc = acc + bias_ref[...]                                   # conv bias (halo lanes stay 0)

    # BatchNorm2d training-mode stats in ONE pass: per-channel sum / sum-of-squares.
    cnt = float(n * hp * wp)
    col_sum = jnp.sum(acc, axis=0, keepdims=True)               # (1, (Wp+2)*Co)
    col_sq = jnp.sum(acc * acc, axis=0, keepdims=True)
    ch_sum = jnp.dot(col_sum, et_ref[...], preferred_element_type=jnp.float32)   # (1, Co)
    ch_sq = jnp.dot(col_sq, et_ref[...], preferred_element_type=jnp.float32)     # (1, Co)
    mean = ch_sum / cnt
    var = jnp.maximum(ch_sq / cnt - mean * mean, 0.0)           # biased variance, f32
    inv = lax.rsqrt(var + eps)
    mean_l = jnp.dot(mean, e_ref[...], preferred_element_type=jnp.float32)  # scatter to lanes
    inv_l = jnp.dot(inv, e_ref[...], preferred_element_type=jnp.float32)

    # halo blocks: acc=0, gam=0, bet=0 -> output stays exactly 0 (acts as next conv's padding)
    y = (acc - mean_l) * (inv_l * gam_ref[...]) + bet_ref[...]
    return jnp.where(y > 0, y, slope * y)                       # LeakyReLU(0.1); 0 -> 0


def _down_kernel(in1_ref,
                 t1_ref, b1_ref, g1_ref, bt1_ref, e1_ref, e1t_ref,
                 t2_ref, b2_ref, g2_ref, bt2_ref, e2_ref, e2t_ref,
                 o_ref, pad2_ref, *, n, hp, wp):
    hpad = hp + 2
    y1 = _conv_bn_lrelu(in1_ref, t1_ref, b1_ref, g1_ref, bt1_ref, e1_ref, e1t_ref,
                        n=n, hp=hp, wp=wp)

    # Stage-2 padded slab: zero ONLY the two halo rows (column halo already zero in y1).
    wl = pad2_ref.shape[-1]
    pad2_ref[:, 0:1, :] = jnp.zeros((n, 1, wl), jnp.float32)
    pad2_ref[:, hpad - 1:hpad, :] = jnp.zeros((n, 1, wl), jnp.float32)
    pad2_ref[:, 1:hp + 1, :] = y1.reshape(n, hp, wl)

    y2 = _conv_bn_lrelu(pad2_ref, t2_ref, b2_ref, g2_ref, bt2_ref, e2_ref, e2t_ref,
                        n=n, hp=hp, wp=wp)
    o_ref[...] = y2.reshape(n, hp, o_ref.shape[-1])


def _make_tap_mats(w, wp):
    """PyTorch conv weight (Co, Ci, 3, 3) -> 3 structured matrices (3, (wp+2)*Ci, (wp+2)*Co).

    B[dy][xi*Ci + c, xo*Co + o] = w[o, c, dy, dx] where xi = xo - 1 + dx for interior xo;
    the halo output blocks (xo = 0, wp+1) are all-zero columns.
    """
    co, ci, _, _ = w.shape
    wpad = wp + 2
    mats = []
    for dy in range(3):
        b = jnp.zeros((wpad * ci, wpad * co), jnp.float32)
        for dx in range(3):
            blk = jnp.transpose(w[:, :, dy, dx]).astype(jnp.float32)   # (Ci, Co)
            for xo in range(1, wp + 1):
                xi = xo - 1 + dx
                b = b.at[xi * ci:(xi + 1) * ci, xo * co:(xo + 1) * co].set(blk)
        mats.append(b)
    return jnp.stack(mats)


def _make_expand(co, wp):
    """(co, (wp+2)*co) scatter matrix: identity on interior x blocks, zero on halo blocks."""
    eye = jnp.eye(co, dtype=jnp.float32)
    zero = jnp.zeros((co, co), jnp.float32)
    return jnp.concatenate([zero] + [eye] * wp + [zero], axis=1)


def down_forward(x_nchw, params):
    """params = (w1,b1,g1,bt1,w2,b2,g2,bt2) with PyTorch conv weight layout (O,I,3,3)."""
    w1, b1, g1, bt1, w2, b2, g2, bt2 = params
    n, cin, h, w = x_nchw.shape
    hp, wp = h // 2, w // 2
    hpad, wpad = hp + 2, wp + 2
    cmid, cout = w1.shape[0], w2.shape[0]

    x = x_nchw.astype(jnp.float32)
    # MaxPool2d(2) fused with the layout change + halo padding in one XLA pass
    pooled = jnp.max(x.reshape(n, cin, hp, 2, wp, 2), axis=(3, 5))   # (N, Cin, Hp, Wp)
    slab = jnp.transpose(pooled, (0, 2, 3, 1))                       # (N, Hp, Wp, Cin)
    slab = jnp.pad(slab, ((0, 0), (1, 1), (1, 1), (0, 0)))           # zero halo
    slab = slab.reshape(n, hpad, wpad * cin)                         # lanes = (W+2)*Cin

    e1 = _make_expand(cmid, wp)
    e2 = _make_expand(cout, wp)
    tap1 = _make_tap_mats(w1, wp)
    tap2 = _make_tap_mats(w2, wp)
    lane = lambda v, e: jnp.dot(v.reshape(1, -1).astype(jnp.float32), e)  # per-channel -> lanes

    kernel = functools.partial(_down_kernel, n=n, hp=hp, wp=wp)
    out = pl.pallas_call(
        kernel,
        out_shape=jax.ShapeDtypeStruct((n, hp, wpad * cout), jnp.float32),
        in_specs=[pl.BlockSpec(memory_space=pltpu.MemorySpace.VMEM)] * 13,
        out_specs=pl.BlockSpec(memory_space=pltpu.MemorySpace.VMEM),
        scratch_shapes=[pltpu.VMEM((n, hpad, wpad * cmid), jnp.float32)],
        compiler_params=pltpu.CompilerParams(vmem_limit_bytes=32 * 1024 * 1024),
    )(slab,
      tap1, lane(b1, e1), lane(g1, e1), lane(bt1, e1), e1, e1.T,
      tap2, lane(b2, e2), lane(g2, e2), lane(bt2, e2), e2, e2.T)

    out = out.reshape(n, hp, wpad, cout)[:, :, 1:wp + 1, :]          # drop halo columns
    return jnp.transpose(out, (0, 3, 1, 2))                          # back to NCHW


def down_reference(x, params):
    """Pure-JAX reference (NCHW) with identical semantics, for validation."""
    w1, b1, g1, bt1, w2, b2, g2, bt2 = params
    n, c, h, w = x.shape
    xp = x.reshape(n, c, h // 2, 2, w // 2, 2).max(axis=(3, 5))

    def block(y, wt, b, g, bt):
        y = lax.conv_general_dilated(
            y, wt, (1, 1), ((1, 1), (1, 1)),
            dimension_numbers=('NCHW', 'OIHW', 'NCHW'))
        y = y + b[None, :, None, None]
        mean = y.mean(axis=(0, 2, 3), keepdims=True)
        var = ((y - mean) ** 2).mean(axis=(0, 2, 3), keepdims=True)
        y = (y - mean) * lax.rsqrt(var + 1e-5)
        y = y * g[None, :, None, None] + bt[None, :, None, None]
        return jnp.where(y > 0, y, 0.1 * y)

    y = block(xp, w1, b1, g1, bt1)
    y = block(y, w2, b2, g2, bt2)
    return y


if __name__ == "__main__":
    key = jax.random.PRNGKey(0)
    ks = jax.random.split(key, 9)

    # Small shapes consistent with Down(in_channels=4, out_channels=8)
    N, Cin, H, W = 2, 4, 16, 16
    Cmid = Cout = 8

    x = jax.random.normal(ks[0], (N, Cin, H, W), jnp.float32)

    w1 = 0.1 * jax.random.normal(ks[1], (Cmid, Cin, 3, 3), jnp.float32)   # PyTorch (O,I,kh,kw)
    b1 = 0.1 * jax.random.normal(ks[2], (Cmid,), jnp.float32)
    g1 = 1.0 + 0.1 * jax.random.normal(ks[3], (Cmid,), jnp.float32)       # BN weight
    bt1 = 0.1 * jax.random.normal(ks[4], (Cmid,), jnp.float32)            # BN bias
    w2 = 0.1 * jax.random.normal(ks[5], (Cout, Cmid, 3, 3), jnp.float32)
    b2 = 0.1 * jax.random.normal(ks[6], (Cout,), jnp.float32)
    g2 = 1.0 + 0.1 * jax.random.normal(ks[7], (Cout,), jnp.float32)
    bt2 = 0.1 * jax.random.normal(ks[8], (Cout,), jnp.float32)

    params = (w1, b1, g1, bt1, w2, b2, g2, bt2)

    out = jax.jit(down_forward)(x, params)
    out = jax.block_until_ready(out)
    assert out.shape == (N, Cout, H // 2, W // 2), out.shape

    ref = jax.block_until_ready(down_reference(x, params))
    err = float(jnp.max(jnp.abs(out - ref)))
    assert err < 5e-2, f"max abs error too large: {err}"

    print("KERNEL_OK")
</pallas_src>

<mosaic_0001>
module attributes {stable_mosaic.version = 11 : i64} {
  func.func @_down_kernel(%arg0: memref<2x10x40xf32, #tpu.memory_space<vmem>>, %arg1: memref<3x40x80xf32, #tpu.memory_space<vmem>>, %arg2: memref<1x80xf32, #tpu.memory_space<vmem>>, %arg3: memref<1x80xf32, #tpu.memory_space<vmem>>, %arg4: memref<1x80xf32, #tpu.memory_space<vmem>>, %arg5: memref<8x80xf32, #tpu.memory_space<vmem>>, %arg6: memref<80x8xf32, #tpu.memory_space<vmem>>, %arg7: memref<3x80x80xf32, #tpu.memory_space<vmem>>, %arg8: memref<1x80xf32, #tpu.memory_space<vmem>>, %arg9: memref<1x80xf32, #tpu.memory_space<vmem>>, %arg10: memref<1x80xf32, #tpu.memory_space<vmem>>, %arg11: memref<8x80xf32, #tpu.memory_space<vmem>>, %arg12: memref<80x8xf32, #tpu.memory_space<vmem>>, %arg13: memref<2x8x80xf32, #tpu.memory_space<vmem>>, %arg14: memref<2x10x80xf32, #tpu.memory_space<vmem>>) attributes {dimension_semantics = [], scalar_prefetch = 0 : i64, scratch_operands = 1 : i64, tpu.core_type = #tpu.core_type<tc>} {
    %c0 = arith.constant 0 : index
    %c0_0 = arith.constant 0 : index
    %c0_1 = arith.constant 0 : index
    %0 = vector.load %arg0[%c0, %c0_0, %c0_1] : memref<2x10x40xf32, #tpu.memory_space<vmem>>, vector<2x8x40xf32>
    %1 = vector.shape_cast %0 : vector<2x8x40xf32> to vector<16x40xf32>
    %c0_2 = arith.constant 0 : index
    %c0_3 = arith.constant 0 : index
    %c0_4 = arith.constant 0 : index
    %2 = vector.load %arg1[%c0_2, %c0_3, %c0_4] : memref<3x40x80xf32, #tpu.memory_space<vmem>>, vector<1x40x80xf32>
    %3 = vector.shape_cast %2 : vector<1x40x80xf32> to vector<40x80xf32>
    %cst = arith.constant dense<0.000000e+00> : vector<16x80xf32>
    %4 = tpu.matmul %1, %3, %cst {dimension_numbers = #tpu.dot_dimension_numbers<[1], [0], [0], [1], [0, 0, 1, 1], [], []>} : vector<16x40xf32>, vector<40x80xf32>, vector<16x80xf32> -> vector<16x80xf32>
    %c0_5 = arith.constant 0 : index
    %c1 = arith.constant 1 : index
    %c0_6 = arith.constant 0 : index
    %5 = vector.load %arg0[%c0_5, %c1, %c0_6] : memref<2x10x40xf32, #tpu.memory_space<vmem>>, vector<2x8x40xf32>
    %6 = vector.shape_cast %5 : vector<2x8x40xf32> to vector<16x40xf32>
    %c1_7 = arith.constant 1 : index
    %c0_8 = arith.constant 0 : index
    %c0_9 = arith.constant 0 : index
    %7 = vector.load %arg1[%c1_7, %c0_8, %c0_9] : memref<3x40x80xf32, #tpu.memory_space<vmem>>, vector<1x40x80xf32>
    %8 = vector.shape_cast %7 : vector<1x40x80xf32> to vector<40x80xf32>
    %cst_10 = arith.constant dense<0.000000e+00> : vector<16x80xf32>
    %9 = tpu.matmul %6, %8, %cst_10 {dimension_numbers = #tpu.dot_dimension_numbers<[1], [0], [0], [1], [0, 0, 1, 1], [], []>} : vector<16x40xf32>, vector<40x80xf32>, vector<16x80xf32> -> vector<16x80xf32>
    %10 = arith.addf %4, %9 : vector<16x80xf32>
    %c0_11 = arith.constant 0 : index
    %c2 = arith.constant 2 : index
    %c0_12 = arith.constant 0 : index
    %11 = vector.load %arg0[%c0_11, %c2, %c0_12] : memref<2x10x40xf32, #tpu.memory_space<vmem>>, vector<2x8x40xf32>
    %12 = vector.shape_cast %11 : vector<2x8x40xf32> to vector<16x40xf32>
    %c2_13 = arith.constant 2 : index
    %c0_14 = arith.constant 0 : index
    %c0_15 = arith.constant 0 : index
    %13 = vector.load %arg1[%c2_13, %c0_14, %c0_15] : memref<3x40x80xf32, #tpu.memory_space<vmem>>, vector<1x40x80xf32>
    %14 = vector.shape_cast %13 : vector<1x40x80xf32> to vector<40x80xf32>
    %cst_16 = arith.constant dense<0.000000e+00> : vector<16x80xf32>
    %15 = tpu.matmul %12, %14, %cst_16 {dimension_numbers = #tpu.dot_dimension_numbers<[1], [0], [0], [1], [0, 0, 1, 1], [], []>} : vector<16x40xf32>, vector<40x80xf32>, vector<16x80xf32> -> vector<16x80xf32>
    %16 = arith.addf %10, %15 : vector<16x80xf32>
    %c0_17 = arith.constant 0 : index
    %c0_18 = arith.constant 0 : index
    %17 = vector.load %arg2[%c0_17, %c0_18] : memref<1x80xf32, #tpu.memory_space<vmem>>, vector<1x80xf32>
    %18 = vector.broadcast %17 : vector<1x80xf32> to vector<16x80xf32>
    %19 = arith.addf %16, %18 : vector<16x80xf32>
    %cst_19 = arith.constant dense<0.000000e+00> : vector<80xf32>
    %20 = vector.multi_reduction <add>, %19, %cst_19 [0] : vector<16x80xf32> to vector<80xf32>
    %21 = vector.shape_cast %20 : vector<80xf32> to vector<1x80xf32>
    %22 = arith.mulf %19, %19 : vector<16x80xf32>
    %cst_20 = arith.constant dense<0.000000e+00> : vector<80xf32>
    %23 = vector.multi_reduction <add>, %22, %cst_20 [0] : vector<16x80xf32> to vector<80xf32>
    %24 = vector.shape_cast %23 : vector<80xf32> to vector<1x80xf32>
    %c0_21 = arith.constant 0 : index
    %c0_22 = arith.constant 0 : index
    %25 = vector.load %arg6[%c0_21, %c0_22] : memref<80x8xf32, #tpu.memory_space<vmem>>, vector<80x8xf32>
    %cst_23 = arith.constant dense<0.000000e+00> : vector<1x8xf32>
    %26 = tpu.matmul %21, %25, %cst_23 {dimension_numbers = #tpu.dot_dimension_numbers<[1], [0], [0], [1], [0, 0, 1, 1], [], []>} : vector<1x80xf32>, vector<80x8xf32>, vector<1x8xf32> -> vector<1x8xf32>
    %c0_24 = arith.constant 0 : index
    %c0_25 = arith.constant 0 : index
    %27 = vector.load %arg6[%c0_24, %c0_25] : memref<80x8xf32, #tpu.memory_space<vmem>>, vector<80x8xf32>
    %cst_26 = arith.constant dense<0.000000e+00> : vector<1x8xf32>
    %28 = tpu.matmul %24, %27, %cst_26 {dimension_numbers = #tpu.dot_dimension_numbers<[1], [0], [0], [1], [0, 0, 1, 1], [], []>} : vector<1x80xf32>, vector<80x8xf32>, vector<1x8xf32> -> vector<1x8xf32>
    %cst_27 = arith.constant 1.280000e+02 : f32
    %29 = vector.broadcast %cst_27 : f32 to vector<1x8xf32>
    %30 = arith.divf %26, %29 : vector<1x8xf32>
    %cst_28 = arith.constant 1.280000e+02 : f32
    %31 = vector.broadcast %cst_28 : f32 to vector<1x8xf32>
    %32 = arith.divf %28, %31 : vector<1x8xf32>
    %33 = arith.mulf %30, %30 : vector<1x8xf32>
    %34 = arith.subf %32, %33 : vector<1x8xf32>
    %cst_29 = arith.constant 0.000000e+00 : f32
    %35 = vector.broadcast %cst_29 : f32 to vector<1x8xf32>
    %36 = arith.maximumf %34, %35 : vector<1x8xf32>
    %cst_30 = arith.constant 9.99999974E-6 : f32
    %37 = vector.broadcast %cst_30 : f32 to vector<1x8xf32>
    %38 = arith.addf %36, %37 : vector<1x8xf32>
    %39 = math.rsqrt %38 : vector<1x8xf32>
    %c0_31 = arith.constant 0 : index
    %c0_32 = arith.constant 0 : index
    %40 = vector.load %arg5[%c0_31, %c0_32] : memref<8x80xf32, #tpu.memory_space<vmem>>, vector<8x80xf32>
    %cst_33 = arith.constant dense<0.000000e+00> : vector<1x80xf32>
    %41 = tpu.matmul %30, %40, %cst_33 {dimension_numbers = #tpu.dot_dimension_numbers<[1], [0], [0], [1], [0, 0, 1, 1], [], []>} : vector<1x8xf32>, vector<8x80xf32>, vector<1x80xf32> -> vector<1x80xf32>
    %c0_34 = arith.constant 0 : index
    %c0_35 = arith.constant 0 : index
    %42 = vector.load %arg5[%c0_34, %c0_35] : memref<8x80xf32, #tpu.memory_space<vmem>>, vector<8x80xf32>
    %cst_36 = arith.constant dense<0.000000e+00> : vector<1x80xf32>
    %43 = tpu.matmul %39, %42, %cst_36 {dimension_numbers = #tpu.dot_dimension_numbers<[1], [0], [0], [1], [0, 0, 1, 1], [], []>} : vector<1x8xf32>, vector<8x80xf32>, vector<1x80xf32> -> vector<1x80xf32>
    %44 = vector.broadcast %41 : vector<1x80xf32> to vector<16x80xf32>
    %45 = arith.subf %19, %44 : vector<16x80xf32>
    %c0_37 = arith.constant 0 : index
    %c0_38 = arith.constant 0 : index
    %46 = vector.load %arg3[%c0_37, %c0_38] : memref<1x80xf32, #tpu.memory_space<vmem>>, vector<1x80xf32>
    %47 = arith.mulf %43, %46 : vector<1x80xf32>
    %48 = vector.broadcast %47 : vector<1x80xf32> to vector<16x80xf32>
    %49 = arith.mulf %45, %48 : vector<16x80xf32>
    %c0_39 = arith.constant 0 : index
    %c0_40 = arith.constant 0 : index
    %50 = vector.load %arg4[%c0_39, %c0_40] : memref<1x80xf32, #tpu.memory_space<vmem>>, vector<1x80xf32>
    %51 = vector.broadcast %50 : vector<1x80xf32> to vector<16x80xf32>
    %52 = arith.addf %49, %51 : vector<16x80xf32>
    %cst_41 = arith.constant 0.000000e+00 : f32
    %53 = vector.broadcast %cst_41 : f32 to vector<16x80xf32>
    %54 = arith.cmpf ogt, %52, %53 : vector<16x80xf32>
    %cst_42 = arith.constant 1.000000e-01 : f32
    %55 = vector.broadcast %cst_42 : f32 to vector<16x80xf32>
    %56 = arith.mulf %55, %52 : vector<16x80xf32>
    %57 = arith.select %54, %52, %56 : vector<16x80xi1>, vector<16x80xf32>
    %cst_43 = arith.constant 0.000000e+00 : f32
    %58 = vector.broadcast %cst_43 : f32 to vector<2x1x80xf32>
    %c0_44 = arith.constant 0 : index
    %c0_45 = arith.constant 0 : index
    %c0_46 = arith.constant 0 : index
    %59 = vector.load %arg14[%c0_44, %c0_45, %c0_46] : memref<2x10x80xf32, #tpu.memory_space<vmem>>, vector<2x1x80xf32>
    tpu.vector_store %arg14[%c0_44, %c0_45, %c0_46], %58 {strides = array<i32>} : memref<2x10x80xf32, #tpu.memory_space<vmem>>, vector<2x1x80xf32>,
    %cst_47 = arith.constant 0.000000e+00 : f32
    %60 = vector.broadcast %cst_47 : f32 to vector<2x1x80xf32>
    %c0_48 = arith.constant 0 : index
    %c9 = arith.constant 9 : index
    %c0_49 = arith.constant 0 : index
    %61 = vector.load %arg14[%c0_48, %c9, %c0_49] : memref<2x10x80xf32, #tpu.memory_space<vmem>>, vector<2x1x80xf32>
    tpu.vector_store %arg14[%c0_48, %c9, %c0_49], %60 {strides = array<i32>} : memref<2x10x80xf32, #tpu.memory_space<vmem>>, vector<2x1x80xf32>,
    %62 = vector.shape_cast %57 : vector<16x80xf32> to vector<2x8x80xf32>
    %c0_50 = arith.constant 0 : index
    %c1_51 = arith.constant 1 : index
    %c0_52 = arith.constant 0 : index
    %63 = vector.load %arg14[%c0_50, %c1_51, %c0_52] : memref<2x10x80xf32, #tpu.memory_space<vmem>>, vector<2x8x80xf32>
    tpu.vector_store %arg14[%c0_50, %c1_51, %c0_52], %62 {strides = array<i32>} : memref<2x10x80xf32, #tpu.memory_space<vmem>>, vector<2x8x80xf32>,
    %c0_53 = arith.constant 0 : index
    %c0_54 = arith.constant 0 : index
    %c0_55 = arith.constant 0 : index
    %64 = vector.load %arg14[%c0_53, %c0_54, %c0_55] : memref<2x10x80xf32, #tpu.memory_space<vmem>>, vector<2x8x80xf32>
    %65 = vector.shape_cast %64 : vector<2x8x80xf32> to vector<16x80xf32>
    %c0_56 = arith.constant 0 : index
    %c0_57 = arith.constant 0 : index
    %c0_58 = arith.constant 0 : index
    %66 = vector.load %arg7[%c0_56, %c0_57, %c0_58] : memref<3x80x80xf32, #tpu.memory_space<vmem>>, vector<1x80x80xf32>
    %67 = vector.shape_cast %66 : vector<1x80x80xf32> to vector<80x80xf32>
    %cst_59 = arith.constant dense<0.000000e+00> : vector<16x80xf32>
    %68 = tpu.matmul %65, %67, %cst_59 {dimension_numbers = #tpu.dot_dimension_numbers<[1], [0], [0], [1], [0, 0, 1, 1], [], []>} : vector<16x80xf32>, vector<80x80xf32>, vector<16x80xf32> -> vector<16x80xf32>
    %c0_60 = arith.constant 0 : index
    %c1_61 = arith.constant 1 : index
    %c0_62 = arith.constant 0 : index
    %69 = vector.load %arg14[%c0_60, %c1_61, %c0_62] : memref<2x10x80xf32, #tpu.memory_space<vmem>>, vector<2x8x80xf32>
    %70 = vector.shape_cast %69 : vector<2x8x80xf32> to vector<16x80xf32>
    %c1_63 = arith.constant 1 : index
    %c0_64 = arith.constant 0 : index
    %c0_65 = arith.constant 0 : index
    %71 = vector.load %arg7[%c1_63, %c0_64, %c0_65] : memref<3x80x80xf32, #tpu.memory_space<vmem>>, vector<1x80x80xf32>
    %72 = vector.shape_cast %71 : vector<1x80x80xf32> to vector<80x80xf32>
    %cst_66 = arith.constant dense<0.000000e+00> : vector<16x80xf32>
    %73 = tpu.matmul %70, %72, %cst_66 {dimension_numbers = #tpu.dot_dimension_numbers<[1], [0], [0], [1], [0, 0, 1, 1], [], []>} : vector<16x80xf32>, vector<80x80xf32>, vector<16x80xf32> -> vector<16x80xf32>
    %74 = arith.addf %68, %73 : vector<16x80xf32>
    %c0_67 = arith.constant 0 : index
    %c2_68 = arith.constant 2 : index
    %c0_69 = arith.constant 0 : index
    %75 = vector.load %arg14[%c0_67, %c2_68, %c0_69] : memref<2x10x80xf32, #tpu.memory_space<vmem>>, vector<2x8x80xf32>
    %76 = vector.shape_cast %75 : vector<2x8x80xf32> to vector<16x80xf32>
    %c2_70 = arith.constant 2 : index
    %c0_71 = arith.constant 0 : index
    %c0_72 = arith.constant 0 : index
    %77 = vector.load %arg7[%c2_70, %c0_71, %c0_72] : memref<3x80x80xf32, #tpu.memory_space<vmem>>, vector<1x80x80xf32>
    %78 = vector.shape_cast %77 : vector<1x80x80xf32> to vector<80x80xf32>
    %cst_73 = arith.constant dense<0.000000e+00> : vector<16x80xf32>
    %79 = tpu.matmul %76, %78, %cst_73 {dimension_numbers = #tpu.dot_dimension_numbers<[1], [0], [0], [1], [0, 0, 1, 1], [], []>} : vector<16x80xf32>, vector<80x80xf32>, vector<16x80xf32> -> vector<16x80xf32>
    %80 = arith.addf %74, %79 : vector<16x80xf32>
    %c0_74 = arith.constant 0 : index
    %c0_75 = arith.constant 0 : index
    %81 = vector.load %arg8[%c0_74, %c0_75] : memref<1x80xf32, #tpu.memory_space<vmem>>, vector<1x80xf32>
    %82 = vector.broadcast %81 : vector<1x80xf32> to vector<16x80xf32>
    %83 = arith.addf %80, %82 : vector<16x80xf32>
    %cst_76 = arith.constant dense<0.000000e+00> : vector<80xf32>
    %84 = vector.multi_reduction <add>, %83, %cst_76 [0] : vector<16x80xf32> to vector<80xf32>
    %85 = vector.shape_cast %84 : vector<80xf32> to vector<1x80xf32>
    %86 = arith.mulf %83, %83 : vector<16x80xf32>
    %cst_77 = arith.constant dense<0.000000e+00> : vector<80xf32>
    %87 = vector.multi_reduction <add>, %86, %cst_77 [0] : vector<16x80xf32> to vector<80xf32>
    %88 = vector.shape_cast %87 : vector<80xf32> to vector<1x80xf32>
    %c0_78 = arith.constant 0 : index
    %c0_79 = arith.constant 0 : index
    %89 = vector.load %arg12[%c0_78, %c0_79] : memref<80x8xf32, #tpu.memory_space<vmem>>, vector<80x8xf32>
    %cst_80 = arith.constant dense<0.000000e+00> : vector<1x8xf32>
    %90 = tpu.matmul %85, %89, %cst_80 {dimension_numbers = #tpu.dot_dimension_numbers<[1], [0], [0], [1], [0, 0, 1, 1], [], []>} : vector<1x80xf32>, vector<80x8xf32>, vector<1x8xf32> -> vector<1x8xf32>
    %c0_81 = arith.constant 0 : index
    %c0_82 = arith.constant 0 : index
    %91 = vector.load %arg12[%c0_81, %c0_82] : memref<80x8xf32, #tpu.memory_space<vmem>>, vector<80x8xf32>
    %cst_83 = arith.constant dense<0.000000e+00> : vector<1x8xf32>
    %92 = tpu.matmul %88, %91, %cst_83 {dimension_numbers = #tpu.dot_dimension_numbers<[1], [0], [0], [1], [0, 0, 1, 1], [], []>} : vector<1x80xf32>, vector<80x8xf32>, vector<1x8xf32> -> vector<1x8xf32>
    %cst_84 = arith.constant 1.280000e+02 : f32
    %93 = vector.broadcast %cst_84 : f32 to vector<1x8xf32>
    %94 = arith.divf %90, %93 : vector<1x8xf32>
    %cst_85 = arith.constant 1.280000e+02 : f32
    %95 = vector.broadcast %cst_85 : f32 to vector<1x8xf32>
    %96 = arith.divf %92, %95 : vector<1x8xf32>
    %97 = arith.mulf %94, %94 : vector<1x8xf32>
    %98 = arith.subf %96, %97 : vector<1x8xf32>
    %cst_86 = arith.constant 0.000000e+00 : f32
    %99 = vector.broadcast %cst_86 : f32 to vector<1x8xf32>
    %100 = arith.maximumf %98, %99 : vector<1x8xf32>
    %cst_87 = arith.constant 9.99999974E-6 : f32
    %101 = vector.broadcast %cst_87 : f32 to vector<1x8xf32>
    %102 = arith.addf %100, %101 : vector<1x8xf32>
    %103 = math.rsqrt %102 : vector<1x8xf32>
    %c0_88 = arith.constant 0 : index
    %c0_89 = arith.constant 0 : index
    %104 = vector.load %arg11[%c0_88, %c0_89] : memref<8x80xf32, #tpu.memory_space<vmem>>, vector<8x80xf32>
    %cst_90 = arith.constant dense<0.000000e+00> : vector<1x80xf32>
    %105 = tpu.matmul %94, %104, %cst_90 {dimension_numbers = #tpu.dot_dimension_numbers<[1], [0], [0], [1], [0, 0, 1, 1], [], []>} : vector<1x8xf32>, vector<8x80xf32>, vector<1x80xf32> -> vector<1x80xf32>
    %c0_91 = arith.constant 0 : index
    %c0_92 = arith.constant 0 : index
    %106 = vector.load %arg11[%c0_91, %c0_92] : memref<8x80xf32, #tpu.memory_space<vmem>>, vector<8x80xf32>
    %cst_93 = arith.constant dense<0.000000e+00> : vector<1x80xf32>
    %107 = tpu.matmul %103, %106, %cst_93 {dimension_numbers = #tpu.dot_dimension_numbers<[1], [0], [0], [1], [0, 0, 1, 1], [], []>} : vector<1x8xf32>, vector<8x80xf32>, vector<1x80xf32> -> vector<1x80xf32>
    %108 = vector.broadcast %105 : vector<1x80xf32> to vector<16x80xf32>
    %109 = arith.subf %83, %108 : vector<16x80xf32>
    %c0_94 = arith.constant 0 : index
    %c0_95 = arith.constant 0 : index
    %110 = vector.load %arg9[%c0_94, %c0_95] : memref<1x80xf32, #tpu.memory_space<vmem>>, vector<1x80xf32>
    %111 = arith.mulf %107, %110 : vector<1x80xf32>
    %112 = vector.broadcast %111 : vector<1x80xf32> to vector<16x80xf32>
    %113 = arith.mulf %109, %112 : vector<16x80xf32>
    %c0_96 = arith.constant 0 : index
    %c0_97 = arith.constant 0 : index
    %114 = vector.load %arg10[%c0_96, %c0_97] : memref<1x80xf32, #tpu.memory_space<vmem>>, vector<1x80xf32>
    %115 = vector.broadcast %114 : vector<1x80xf32> to vector<16x80xf32>
    %116 = arith.addf %113, %115 : vector<16x80xf32>
    %cst_98 = arith.constant 0.000000e+00 : f32
    %117 = vector.broadcast %cst_98 : f32 to vector<16x80xf32>
    %118 = arith.cmpf ogt, %116, %117 : vector<16x80xf32>
    %cst_99 = arith.constant 1.000000e-01 : f32
    %119 = vector.broadcast %cst_99 : f32 to vector<16x80xf32>
    %120 = arith.mulf %119, %116 : vector<16x80xf32>
    %121 = arith.select %118, %116, %120 : vector<16x80xi1>, vector<16x80xf32>
    %122 = vector.shape_cast %121 : vector<16x80xf32> to vector<2x8x80xf32>
    %c0_100 = arith.constant 0 : index
    %c0_101 = arith.constant 0 : index
    %c0_102 = arith.constant 0 : index
    %123 = vector.load %arg13[%c0_100, %c0_101, %c0_102] : memref<2x8x80xf32, #tpu.memory_space<vmem>>, vector<2x8x80xf32>
    tpu.vector_store %arg13[%c0_100, %c0_101, %c0_102], %122 {strides = array<i32>} : memref<2x8x80xf32, #tpu.memory_space<vmem>>, vector<2x8x80xf32>,
    return
  }
}

</mosaic_0001>

<llo_original>
// kernel: down_forward.1
$region0: #{down_forward.1}
  #allocation0 [shape = 'u32[]', space=smem, size = 0x4, offset = 0x4, fixed_abs, tag = 'smem constant byte address 0x4 - core index']
  #allocation1 [shape = 'u32[72,128]{1,0:T(1,128)}', space=vmem, size = 0x9000, scoped, tag = 'internal scratch']
  #allocation2 [shape = 'f32[2,10,80]{2,1,0:T(8,128)}', space=vmem, size = 0x4000, scoped, tag = 'scratch operand']
  %s0 = inlined_call_operand.vmem [shape: f32[2,10,40], index: 0, kind: input, shape index: {}]
  %s1 = inlined_call_operand.vmem [shape: f32[3,40,80], index: 1, kind: input, shape index: {}]
  %s2 = inlined_call_operand.vmem [shape: f32[1,80], index: 2, kind: input, shape index: {}]
  %s3 = inlined_call_operand.vmem [shape: f32[1,80], index: 3, kind: input, shape index: {}]
  %s4 = inlined_call_operand.vmem [shape: f32[1,80], index: 4, kind: input, shape index: {}]
  %s5 = inlined_call_operand.vmem [shape: f32[8,80], index: 5, kind: input, shape index: {}, may-alias: {5,11}]
  %s6 = inlined_call_operand.vmem [shape: f32[80,8], index: 6, kind: input, shape index: {}, may-alias: {6,12}]
  %s7 = inlined_call_operand.vmem [shape: f32[3,80,80], index: 7, kind: input, shape index: {}]
  %s8 = inlined_call_operand.vmem [shape: f32[1,80], index: 8, kind: input, shape index: {}]
  %s9 = inlined_call_operand.vmem [shape: f32[1,80], index: 9, kind: input, shape index: {}]
  %s10 = inlined_call_operand.vmem [shape: f32[1,80], index: 10, kind: input, shape index: {}]
  %s11 = inlined_call_operand.vmem [shape: f32[8,80], index: 11, kind: input, shape index: {}, may-alias: {5,11}]
  %s12 = inlined_call_operand.vmem [shape: f32[80,8], index: 12, kind: input, shape index: {}, may-alias: {6,12}]
  %s13 = inlined_call_operand.vmem [shape: f32[2,8,80], index: 13, kind: output, shape index: {}]
  %s14 = sld [smem:[#allocation0]]
  $region62: #{down_forward.1} parent=0
    _
  %s16 = ssub.s32 1, %s14
  %s17 = scalar_select 0, %s16, %s14
  // Predicated region
  $region2: #{down_forward.1} parent=0 // pred_check
    _
  $region3: #{down_forward.1} parent=0 // pred_check_branch
    %19 = sbr.rel (0) target = $region5
  $region4: #{down_forward.1} parent=0 // pred_region
    _
  $region5: #{down_forward.1} parent=0 // pred_fallthru
    _
  // Predicated region
  $region6: #{down_forward.1} parent=0 // pred_check
    _
  $region7: #{down_forward.1} parent=0 // pred_check_branch
    %21 = sbr.rel (0) target = $region9
  $region8: #{down_forward.1} parent=0 // pred_region
    _
  $region9: #{down_forward.1} parent=0 // pred_fallthru
    _
  // Predicated region
  $region10: #{down_forward.1} parent=0 // pred_check
    _
  $region11: #{down_forward.1} parent=0 // pred_check_branch
    %23 = sbr.rel (0) target = $region13
  $region12: #{down_forward.1} parent=0 // pred_region
    _
  $region13: #{down_forward.1} parent=0 // pred_fallthru
    _
  // Predicated region
  $region14: #{down_forward.1} parent=0 // pred_check
    _
  $region15: #{down_forward.1} parent=0 // pred_check_branch
    %25 = sbr.rel (0) target = $region17
  $region16: #{down_forward.1} parent=0 // pred_region
    _
  $region17: #{down_forward.1} parent=0 // pred_fallthru
    _
  // Predicated region
  $region18: #{down_forward.1} parent=0 // pred_check
    _
  $region19: #{down_forward.1} parent=0 // pred_check_branch
    %27 = sbr.rel (0) target = $region21
  $region20: #{down_forward.1} parent=0 // pred_region
    _
  $region21: #{down_forward.1} parent=0 // pred_fallthru
    _
  // Predicated region
  $region22: #{down_forward.1} parent=0 // pred_check
    _
  $region23: #{down_forward.1} parent=0 // pred_check_branch
    %29 = sbr.rel (0) target = $region25
  $region24: #{down_forward.1} parent=0 // pred_region
    _
  $region25: #{down_forward.1} parent=0 // pred_fallthru
    _
  // Predicated region
  $region26: #{down_forward.1} parent=0 // pred_check
    _
  $region27: #{down_forward.1} parent=0 // pred_check_branch
    %31 = sbr.rel (0) target = $region29
  $region28: #{down_forward.1} parent=0 // pred_region
    _
  $region29: #{down_forward.1} parent=0 // pred_fallthru
    _
  // Predicated region
  $region30: #{down_forward.1} parent=0 // pred_check
    _
  $region31: #{down_forward.1} parent=0 // pred_check_branch
    %33 = sbr.rel (0) target = $region33
  $region32: #{down_forward.1} parent=0 // pred_region
    _
  $region33: #{down_forward.1} parent=0 // pred_fallthru
    _
  // Predicated region
  $region34: #{down_forward.1} parent=0 // pred_check
    _
  $region35: #{down_forward.1} parent=0 // pred_check_branch
    %35 = sbr.rel (0) target = $region37
  $region36: #{down_forward.1} parent=0 // pred_region
    _
  $region37: #{down_forward.1} parent=0 // pred_fallthru
    _
  // Predicated region
  $region38: #{down_forward.1} parent=0 // pred_check
    _
  $region39: #{down_forward.1} parent=0 // pred_check_branch
    %37 = sbr.rel (0) target = $region41
  $region40: #{down_forward.1} parent=0 // pred_region
    _
  $region41: #{down_forward.1} parent=0 // pred_fallthru
    _
  // Predicated region
  $region42: #{down_forward.1} parent=0 // pred_check
    _
  $region43: #{down_forward.1} parent=0 // pred_check_branch
    %39 = sbr.rel (0) target = $region45
  $region44: #{down_forward.1} parent=0 // pred_region
    _
  $region45: #{down_forward.1} parent=0 // pred_fallthru
    _
  // Predicated region
  $region46: #{down_forward.1} parent=0 // pred_check
    _
  $region47: #{down_forward.1} parent=0 // pred_check_branch
    %41 = sbr.rel (0) target = $region49
  $region48: #{down_forward.1} parent=0 // pred_region
    _
  $region49: #{down_forward.1} parent=0 // pred_fallthru
    _
  // Predicated region
  $region50: #{down_forward.1} parent=0 // pred_check
    _
  $region51: #{down_forward.1} parent=0 // pred_check_branch
    %43 = sbr.rel (0) target = $region53
  $region52: #{down_forward.1} parent=0 // pred_region
    _
  $region53: #{down_forward.1} parent=0 // pred_fallthru
    _
  %v44 = vld [vmem:[%s0] sm:$0xff]
  %v45 = vld [vmem:[%s0 + $0x10] sm:$0xff]
  %v46 = vld [vmem:[%s1] sm:$0xff]
  %v47 = vld [vmem:[%s1 + $0x8] sm:$0xff]
  %v48 = vld [vmem:[%s1 + $0x10] sm:$0xff]
  %v49 = vld [vmem:[%s1 + $0x18] sm:$0xff]
  %v50 = vld [vmem:[%s1 + $0x20] sm:$0xff]
  %v51 = vld [vmem:[%s0 + $0x1] sm:$0xff]
  %v52 = vld [vmem:[%s0 + $0x11] sm:$0xff]
  %s53 = scalar_lea.vmem %s1, 40
  %v54 = vld [vmem:[%s53] sm:$0xff]
  %v55 = vld [vmem:[%s53 + $0x8] sm:$0xff]
  %v56 = vld [vmem:[%s53 + $0x10] sm:$0xff]
  %v57 = vld [vmem:[%s53 + $0x18] sm:$0xff]
  %v58 = vld [vmem:[%s53 + $0x20] sm:$0xff]
  %vm59 = vcmask 326656
  %v61 = vsel %vm59, %v51, 0
  %v64 = vsel %vm59, %v52, 0
  %66 = vmatpush.msra.mxu0 0.0
  %67 = vmatpush.msra.mxu0 0.0
  %68 = vmatpush.msra.mxu0 0.0
  %69 = vmatpush.msra.mxu0 0.0
  %70 = vmatpush.msra.mxu0 0.0
  %71 = vmatpush.msra.mxu0 0.0
  %72 = vmatpush.msra.mxu0 0.0
  %73 = vmatpush.msra.mxu0 0.0
  %74 = vmatpush.msra.mxu0 0.0
  %75 = vmatpush.msra.mxu0 0.0
  %76 = vmatpush.msra.mxu0 0.0
  %77 = vmatpush.msra.mxu0 %v58
  %78 = vmatpush.msra.mxu0 %v57
  %79 = vmatpush.msra.mxu0 %v56
  %80 = vmatpush.msra.mxu0 %v55
  %81 = vmatpush.msra.mxu0 %v54
  %82 = vmatmul.f32.gmra.mxu0 %v61
  %v83 = vpop.f32.mrf.mxu0
  %v84 = vadd.f32 0.0, %v83
  %85 = vmatmul.f32.gmra.mxu0 %v64
  %v86 = vpop.f32.mrf.mxu0
  %v87 = vadd.f32 0.0, %v86
  %88 = vdwg.mxu0
  %v90 = vsel %vm59, %v44, 0
  %v93 = vsel %vm59, %v45, 0
  %95 = vmatpush.msra.mxu0 0.0
  %96 = vmatpush.msra.mxu0 0.0
  %97 = vmatpush.msra.mxu0 0.0
  %98 = vmatpush.msra.mxu0 0.0
  %99 = vmatpush.msra.mxu0 0.0
  %100 = vmatpush.msra.mxu0 0.0
  %101 = vmatpush.msra.mxu0 0.0
  %102 = vmatpush.msra.mxu0 0.0
  %103 = vmatpush.msra.mxu0 0.0
  %104 = vmatpush.msra.mxu0 0.0
  %105 = vmatpush.msra.mxu0 0.0
  %106 = vmatpush.msra.mxu0 %v50
  %107 = vmatpush.msra.mxu0 %v49
  %108 = vmatpush.msra.mxu0 %v48
  %109 = vmatpush.msra.mxu0 %v47
  %110 = vmatpush.msra.mxu0 %v46
  %111 = vmatmul.f32.gmra.mxu0 %v90
  %v112 = vpop.f32.mrf.mxu0
  %v113 = vadd.f32 %v84, %v112
  %114 = vmatmul.f32.gmra.mxu0 %v93
  %v115 = vpop.f32.mrf.mxu0
  %v116 = vadd.f32 %v87, %v115
  %117 = vdwg.mxu0
  %v118 = vld [vmem:[%s0 + $0x2] sm:$0xff]
  %v119 = vld [vmem:[%s0 + $0x12] sm:$0xff]
  %s120 = scalar_lea.vmem %s1, 80
  %v121 = vld [vmem:[%s120] sm:$0xff]
  %v122 = vld [vmem:[%s120 + $0x8] sm:$0xff]
  %v123 = vld [vmem:[%s120 + $0x10] sm:$0xff]
  %v124 = vld [vmem:[%s120 + $0x18] sm:$0xff]
  %v125 = vld [vmem:[%s120 + $0x20] sm:$0xff]
  %v127 = vsel %vm59, %v118, 0
  %v130 = vsel %vm59, %v119, 0
  %132 = vmatpush.msra.mxu0 0.0
  %133 = vmatpush.msra.mxu0 0.0
  %134 = vmatpush.msra.mxu0 0.0
  %135 = vmatpush.msra.mxu0 0.0
  %136 = vmatpush.msra.mxu0 0.0
  %137 = vmatpush.msra.mxu0 0.0
  %138 = vmatpush.msra.mxu0 0.0
  %139 = vmatpush.msra.mxu0 0.0
  %140 = vmatpush.msra.mxu0 0.0
  %141 = vmatpush.msra.mxu0 0.0
  %142 = vmatpush.msra.mxu0 0.0
  %143 = vmatpush.msra.mxu0 %v125
  %144 = vmatpush.msra.mxu0 %v124
  %145 = vmatpush.msra.mxu0 %v123
  %146 = vmatpush.msra.mxu0 %v122
  %147 = vmatpush.msra.mxu0 %v121
  %148 = vmatmul.f32.gmra.mxu0 %v127
  %v149 = vpop.f32.mrf.mxu0
  %v150 = vadd.f32 0.0, %v149
  %151 = vmatmul.f32.gmra.mxu0 %v130
  %v152 = vpop.f32.mrf.mxu0
  %v153 = vadd.f32 0.0, %v152
  %154 = vdwg.mxu0
  %v155 = vadd.f32 %v113, %v150
  %v156 = vadd.f32 %v116, %v153
  %v157 = vld [vmem:[%s2] sm:$0x1]
  %v159 = vperm.slane %v157, 0
  %v161 = vadd.f32 %v155, %v159
  %v162 = vadd.f32 %v156, %v159
  %vm163 = vcmask 654336
  %v164 = vsel %vm163, %v161, 0.0
  %v165 = vsel %vm163, %v162, 0.0
  %v166 = vadd.f32 %v164, %v165
  %v167 = vrot.slane %v166, 4
  %v168 = vadd.f32 %v166, %v167
  %v169 = vrot.slane %v168, 2
  %v170 = vadd.f32 %v168, %v169
  %v171 = vrot.slane %v170, 1
  %v172 = vadd.f32 %v170, %v171
  %v173 = vmul.f32 %v161, %v161
  %v174 = vmul.f32 %v162, %v162
  %v175 = vsel %vm163, %v173, 0.0
  %v176 = vsel %vm163, %v174, 0.0
  %v177 = vadd.f32 %v175, %v176
  %v178 = vrot.slane %v177, 4
  %v179 = vadd.f32 %v177, %v178
  %v180 = vrot.slane %v179, 2
  %v181 = vadd.f32 %v179, %v180
  %v182 = vrot.slane %v181, 1
  %v183 = vadd.f32 %v181, %v182
  %v184 = vld [vmem:[%s6] sm:$0xff]
  %v185 = vld [vmem:[%s6 + $0x8] sm:$0xff]
  %v186 = vld [vmem:[%s6 + $0x10] sm:$0xff]
  %v187 = vld [vmem:[%s6 + $0x18] sm:$0xff]
  %v188 = vld [vmem:[%s6 + $0x20] sm:$0xff]
  %v189 = vld [vmem:[%s6 + $0x28] sm:$0xff]
  %v190 = vld [vmem:[%s6 + $0x30] sm:$0xff]
  %v191 = vld [vmem:[%s6 + $0x38] sm:$0xff]
  %v192 = vld [vmem:[%s6 + $0x40] sm:$0xff]
  %v193 = vld [vmem:[%s6 + $0x48] sm:$0xff]
  %v195 = vsel %vm163, %v172, 0
  %197 = vmatpush.msra.mxu0 0.0
  %198 = vmatpush.msra.mxu0 0.0
  %199 = vmatpush.msra.mxu0 0.0
  %200 = vmatpush.msra.mxu0 0.0
  %201 = vmatpush.msra.mxu0 0.0
  %202 = vmatpush.msra.mxu0 0.0
  %203 = vmatpush.msra.mxu0 %v193
  %204 = vmatpush.msra.mxu0 %v192
  %205 = vmatpush.msra.mxu0 %v191
  %206 = vmatpush.msra.mxu0 %v190
  %207 = vmatpush.msra.mxu0 %v189
  %208 = vmatpush.msra.mxu0 %v188
  %209 = vmatpush.msra.mxu0 %v187
  %210 = vmatpush.msra.mxu0 %v186
  %211 = vmatpush.msra.mxu0 %v185
  %212 = vmatpush.msra.mxu0 %v184
  %213 = vmatmul.f32.gmra.mxu0 %v195
  %v214 = vpop.f32.mrf.mxu0
  %v215 = vadd.f32 0.0, %v214
  %216 = vdwg.mxu0
  %v218 = vsel %vm163, %v183, 0
  %220 = vmatpush.msra.mxu0 0.0
  %221 = vmatpush.msra.mxu0 0.0
  %222 = vmatpush.msra.mxu0 0.0
  %223 = vmatpush.msra.mxu0 0.0
  %224 = vmatpush.msra.mxu0 0.0
  %225 = vmatpush.msra.mxu0 0.0
  %226 = vmatpush.msra.mxu0 %v193
  %227 = vmatpush.msra.mxu0 %v192
  %228 = vmatpush.msra.mxu0 %v191
  %229 = vmatpush.msra.mxu0 %v190
  %230 = vmatpush.msra.mxu0 %v189
  %231 = vmatpush.msra.mxu0 %v188
  %232 = vmatpush.msra.mxu0 %v187
  %233 = vmatpush.msra.mxu0 %v186
  %234 = vmatpush.msra.mxu0 %v185
  %235 = vmatpush.msra.mxu0 %v184
  %236 = vmatmul.f32.gmra.mxu0 %v218
  %v237 = vpop.f32.mrf.mxu0
  %v238 = vadd.f32 0.0, %v237
  %239 = vdwg.mxu0
  %v240 = vrcp.pop 128.0
  %v241 = vmul.f32 128.0, %v240
  %v242 = vsub.f32 1.0, %v241
  %v243 = vmul.f32 %v240, %v242
  %v244 = vadd.f32 %v240, %v243
  %vm245 = vweird.f32 %v240
  %v246 = vsel %vm245, %v240, %v244
  %v247 = vmul.f32 %v215, %v246
  %v248 = vmul.f32 %v238, %v246
  %v249 = vmul.f32 %v247, %v247
  %v250 = vsub.f32 %v248, %v249
  %v251 = vmax.f32 %v250, 0.0
  %v252 = vadd.f32 %v251, 1e-05
  %v253 = vrsqrt.pop %v252
  %v254 = vmul.f32 %v253, %v252
  %v255 = vmul.f32 %v254, %v253
  %v256 = vmul.f32 0.5, %v255
  %v257 = vsub.f32 1.5, %v256
  %v258 = vmul.f32 %v253, %v257
  %vm259 = vweird.f32 %v252
  %vm260 = vweird.f32 %v253
  %vm261 = vmor %vm259, %vm260
  %v262 = vsel %vm261, %v253, %v258
  %v263 = vld [vmem:[%s5] sm:$0xff]
  %vm264 = vcmask 64512
  %v266 = vsel %vm264, %v247, 0
  %268 = vmatpush.msra.mxu0 0.0
  %269 = vmatpush.msra.mxu0 0.0
  %270 = vmatpush.msra.mxu0 0.0
  %271 = vmatpush.msra.mxu0 0.0
  %272 = vmatpush.msra.mxu0 0.0
  %273 = vmatpush.msra.mxu0 0.0
  %274 = vmatpush.msra.mxu0 0.0
  %275 = vmatpush.msra.mxu0 0.0
  %276 = vmatpush.msra.mxu0 0.0
  %277 = vmatpush.msra.mxu0 0.0
  %278 = vmatpush.msra.mxu0 0.0
  %279 = vmatpush.msra.mxu0 0.0
  %280 = vmatpush.msra.mxu0 0.0
  %281 = vmatpush.msra.mxu0 0.0
  %282 = vmatpush.msra.mxu0 0.0
  %283 = vmatpush.msra.mxu0 %v263
  %284 = vmatmul.f32.gmra.mxu0 %v266
  %v285 = vpop.f32.mrf.mxu0
  %v286 = vadd.f32 0.0, %v285
  %287 = vdwg.mxu0
  %v289 = vsel %vm264, %v262, 0
  %291 = vmatpush.msra.mxu0 0.0
  %292 = vmatpush.msra.mxu0 0.0
  %293 = vmatpush.msra.mxu0 0.0
  %294 = vmatpush.msra.mxu0 0.0
  %295 = vmatpush.msra.mxu0 0.0
  %296 = vmatpush.msra.mxu0 0.0
  %297 = vmatpush.msra.mxu0 0.0
  %298 = vmatpush.msra.mxu0 0.0
  %299 = vmatpush.msra.mxu0 0.0
  %300 = vmatpush.msra.mxu0 0.0
  %301 = vmatpush.msra.mxu0 0.0
  %302 = vmatpush.msra.mxu0 0.0
  %303 = vmatpush.msra.mxu0 0.0
  %304 = vmatpush.msra.mxu0 0.0
  %305 = vmatpush.msra.mxu0 0.0
  %306 = vmatpush.msra.mxu0 %v263
  %307 = vmatmul.f32.gmra.mxu0 %v289
  %v308 = vpop.f32.mrf.mxu0
  %v309 = vadd.f32 0.0, %v308
  %310 = vdwg.mxu0
  %v311 = vperm.slane %v286, 0
  %v312 = vsub.f32 %v161, %v311
  %v313 = vsub.f32 %v162, %v311
  %v314 = vld [vmem:[%s3] sm:$0x1]
  %v315 = vmul.f32 %v309, %v314
  %v316 = vperm.slane %v315, 0
  %v317 = vmul.f32 %v312, %v316
  %v318 = vmul.f32 %v313, %v316
  %v319 = vld [vmem:[%s4] sm:$0x1]
  %v321 = vperm.slane %v319, 0
  %v323 = vadd.f32 %v317, %v321
  %v324 = vadd.f32 %v318, %v321
  %vm325 = vcmp.gt.f32.partialorder %v323, 0.0
  %vm326 = vcmp.gt.f32.partialorder %v324, 0.0
  %v327 = vmul.f32 %v323, 0.1
  %v328 = vmul.f32 %v324, 0.1
  %v329 = vsel %vm325, %v323, %v327
  %v330 = vsel %vm326, %v324, %v328
  %vm331 = vcmask 647168
  %332 = vst.msk [vmem:[#allocation2] sm:$0x1] %vm331, 0.0
  %333 = vst.msk [vmem:[#allocation2 + $0x10] sm:$0x1] %vm331, 0.0
  %334 = vst.msk [vmem:[#allocation2 + $0x9] sm:$0x1] %vm331, 0.0
  %335 = vst.msk [vmem:[#allocation2 + $0x19] sm:$0x1] %vm331, 0.0
  %336 = vst.msk [vmem:[#allocation2 + $0x1] sm:$0xff] %vm163, %v329
  %337 = vst.msk [vmem:[#allocation2 + $0x11] sm:$0xff] %vm163, %v330
  %v338 = vld [vmem:[#allocation2] sm:$0xff]
  %v339 = vld [vmem:[#allocation2 + $0x10] sm:$0xff]
  %v340 = vld [vmem:[%s7] sm:$0xff]
  %v341 = vld [vmem:[%s7 + $0x8] sm:$0xff]
  %v342 = vld [vmem:[%s7 + $0x10] sm:$0xff]
  %v343 = vld [vmem:[%s7 + $0x18] sm:$0xff]
  %v344 = vld [vmem:[%s7 + $0x20] sm:$0xff]
  %v345 = vld [vmem:[%s7 + $0x28] sm:$0xff]
  %v346 = vld [vmem:[%s7 + $0x30] sm:$0xff]
  %v347 = vld [vmem:[%s7 + $0x38] sm:$0xff]
  %v348 = vld [vmem:[%s7 + $0x40] sm:$0xff]
  %v349 = vld [vmem:[%s7 + $0x48] sm:$0xff]
  %v350 = vld [vmem:[#allocation2 + $0x1] sm:$0xff]
  %v351 = vld [vmem:[#allocation2 + $0x11] sm:$0xff]
  %s352 = scalar_lea.vmem %s7, 80
  %v353 = vld [vmem:[%s352] sm:$0xff]
  %v354 = vld [vmem:[%s352 + $0x8] sm:$0xff]
  %v355 = vld [vmem:[%s352 + $0x10] sm:$0xff]
  %v356 = vld [vmem:[%s352 + $0x18] sm:$0xff]
  %v357 = vld [vmem:[%s352 + $0x20] sm:$0xff]
  %v358 = vld [vmem:[%s352 + $0x28] sm:$0xff]
  %v359 = vld [vmem:[%s352 + $0x30] sm:$0xff]
  %v360 = vld [vmem:[%s352 + $0x38] sm:$0xff]
  %v361 = vld [vmem:[%s352 + $0x40] sm:$0xff]
  %v362 = vld [vmem:[%s352 + $0x48] sm:$0xff]
  %v364 = vsel %vm163, %v350, 0
  %v367 = vsel %vm163, %v351, 0
  %369 = vmatpush.msra.mxu0 0.0
  %370 = vmatpush.msra.mxu0 0.0
  %371 = vmatpush.msra.mxu0 0.0
  %372 = vmatpush.msra.mxu0 0.0
  %373 = vmatpush.msra.mxu0 0.0
  %374 = vmatpush.msra.mxu0 0.0
  %375 = vmatpush.msra.mxu0 %v362
  %376 = vmatpush.msra.mxu0 %v361
  %377 = vmatpush.msra.mxu0 %v360
  %378 = vmatpush.msra.mxu0 %v359
  %379 = vmatpush.msra.mxu0 %v358
  %380 = vmatpush.msra.mxu0 %v357
  %381 = vmatpush.msra.mxu0 %v356
  %382 = vmatpush.msra.mxu0 %v355
  %383 = vmatpush.msra.mxu0 %v354
  %384 = vmatpush.msra.mxu0 %v353
  %385 = vmatmul.f32.gmra.mxu0 %v364
  %v386 = vpop.f32.mrf.mxu0
  %v387 = vadd.f32 0.0, %v386
  %388 = vmatmul.f32.gmra.mxu0 %v367
  %v389 = vpop.f32.mrf.mxu0
  %v390 = vadd.f32 0.0, %v389
  %391 = vdwg.mxu0
  %v393 = vsel %vm163, %v338, 0
  %v396 = vsel %vm163, %v339, 0
  %398 = vmatpush.msra.mxu0 0.0
  %399 = vmatpush.msra.mxu0 0.0
  %400 = vmatpush.msra.mxu0 0.0
  %401 = vmatpush.msra.mxu0 0.0
  %402 = vmatpush.msra.mxu0 0.0
  %403 = vmatpush.msra.mxu0 0.0
  %404 = vmatpush.msra.mxu0 %v349
  %405 = vmatpush.msra.mxu0 %v348
  %406 = vmatpush.msra.mxu0 %v347
  %407 = vmatpush.msra.mxu0 %v346
  %408 = vmatpush.msra.mxu0 %v345
  %409 = vmatpush.msra.mxu0 %v344
  %410 = vmatpush.msra.mxu0 %v343
  %411 = vmatpush.msra.mxu0 %v342
  %412 = vmatpush.msra.mxu0 %v341
  %413 = vmatpush.msra.mxu0 %v340
  %414 = vmatmul.f32.gmra.mxu0 %v393
  %v415 = vpop.f32.mrf.mxu0
  %v416 = vadd.f32 %v387, %v415
  %417 = vmatmul.f32.gmra.mxu0 %v396
  %v418 = vpop.f32.mrf.mxu0
  %v419 = vadd.f32 %v390, %v418
  %420 = vdwg.mxu0
  %v421 = vld [vmem:[#allocation2 + $0x2] sm:$0xff]
  %v422 = vld [vmem:[#allocation2 + $0x12] sm:$0xff]
  %s423 = scalar_lea.vmem %s7, 160
  %v424 = vld [vmem:[%s423] sm:$0xff]
  %v425 = vld [vmem:[%s423 + $0x8] sm:$0xff]
  %v426 = vld [vmem:[%s423 + $0x10] sm:$0xff]
  %v427 = vld [vmem:[%s423 + $0x18] sm:$0xff]
  %v428 = vld [vmem:[%s423 + $0x20] sm:$0xff]
  %v429 = vld [vmem:[%s423 + $0x28] sm:$0xff]
  %v430 = vld [vmem:[%s423 + $0x30] sm:$0xff]
  %v431 = vld [vmem:[%s423 + $0x38] sm:$0xff]
  %v432 = vld [vmem:[%s423 + $0x40] sm:$0xff]
  %v433 = vld [vmem:[%s423 + $0x48] sm:$0xff]
  %v435 = vsel %vm163, %v421, 0
  %v438 = vsel %vm163, %v422, 0
  %440 = vmatpush.msra.mxu0 0.0
  %441 = vmatpush.msra.mxu0 0.0
  %442 = vmatpush.msra.mxu0 0.0
  %443 = vmatpush.msra.mxu0 0.0
  %444 = vmatpush.msra.mxu0 0.0
  %445 = vmatpush.msra.mxu0 0.0
  %446 = vmatpush.msra.mxu0 %v433
  %447 = vmatpush.msra.mxu0 %v432
  %448 = vmatpush.msra.mxu0 %v431
  %449 = vmatpush.msra.mxu0 %v430
  %450 = vmatpush.msra.mxu0 %v429
  %451 = vmatpush.msra.mxu0 %v428
  %452 = vmatpush.msra.mxu0 %v427
  %453 = vmatpush.msra.mxu0 %v426
  %454 = vmatpush.msra.mxu0 %v425
  %455 = vmatpush.msra.mxu0 %v424
  %456 = vmatmul.f32.gmra.mxu0 %v435
  %v457 = vpop.f32.mrf.mxu0
  %v458 = vadd.f32 0.0, %v457
  %459 = vmatmul.f32.gmra.mxu0 %v438
  %v460 = vpop.f32.mrf.mxu0
  %v461 = vadd.f32 0.0, %v460
  %462 = vdwg.mxu0
  %v463 = vadd.f32 %v416, %v458
  %v464 = vadd.f32 %v419, %v461
  %v465 = vld [vmem:[%s8] sm:$0x1]
  %v467 = vperm.slane %v465, 0
  %v469 = vadd.f32 %v463, %v467
  %v470 = vadd.f32 %v464, %v467
  %v471 = vsel %vm163, %v469, 0.0
  %v472 = vsel %vm163, %v470, 0.0
  %v473 = vadd.f32 %v471, %v472
  %v474 = vrot.slane %v473, 4
  %v475 = vadd.f32 %v473, %v474
  %v476 = vrot.slane %v475, 2
  %v477 = vadd.f32 %v475, %v476
  %v478 = vrot.slane %v477, 1
  %v479 = vadd.f32 %v477, %v478
  %v480 = vmul.f32 %v469, %v469
  %v481 = vmul.f32 %v470, %v470
  %v482 = vsel %vm163, %v480, 0.0
  %v483 = vsel %vm163, %v481, 0.0
  %v484 = vadd.f32 %v482, %v483
  %v485 = vrot.slane %v484, 4
  %v486 = vadd.f32 %v484, %v485
  %v487 = vrot.slane %v486, 2
  %v488 = vadd.f32 %v486, %v487
  %v489 = vrot.slane %v488, 1
  %v490 = vadd.f32 %v488, %v489
  %v491 = vld [vmem:[%s12] sm:$0xff]
  %v492 = vld [vmem:[%s12 + $0x8] sm:$0xff]
  %v493 = vld [vmem:[%s12 + $0x10] sm:$0xff]
  %v494 = vld [vmem:[%s12 + $0x18] sm:$0xff]
  %v495 = vld [vmem:[%s12 + $0x20] sm:$0xff]
  %v496 = vld [vmem:[%s12 + $0x28] sm:$0xff]
  %v497 = vld [vmem:[%s12 + $0x30] sm:$0xff]
  %v498 = vld [vmem:[%s12 + $0x38] sm:$0xff]
  %v499 = vld [vmem:[%s12 + $0x40] sm:$0xff]
  %v500 = vld [vmem:[%s12 + $0x48] sm:$0xff]
  %v502 = vsel %vm163, %v479, 0
  %504 = vmatpush.msra.mxu0 0.0
  %505 = vmatpush.msra.mxu0 0.0
  %506 = vmatpush.msra.mxu0 0.0
  %507 = vmatpush.msra.mxu0 0.0
  %508 = vmatpush.msra.mxu0 0.0
  %509 = vmatpush.msra.mxu0 0.0
  %510 = vmatpush.msra.mxu0 %v500
  %511 = vmatpush.msra.mxu0 %v499
  %512 = vmatpush.msra.mxu0 %v498
  %513 = vmatpush.msra.mxu0 %v497
  %514 = vmatpush.msra.mxu0 %v496
  %515 = vmatpush.msra.mxu0 %v495
  %516 = vmatpush.msra.mxu0 %v494
  %517 = vmatpush.msra.mxu0 %v493
  %518 = vmatpush.msra.mxu0 %v492
  %519 = vmatpush.msra.mxu0 %v491
  %520 = vmatmul.f32.gmra.mxu0 %v502
  %v521 = vpop.f32.mrf.mxu0
  %v522 = vadd.f32 0.0, %v521
  %523 = vdwg.mxu0
  %v525 = vsel %vm163, %v490, 0
  %527 = vmatpush.msra.mxu0 0.0
  %528 = vmatpush.msra.mxu0 0.0
  %529 = vmatpush.msra.mxu0 0.0
  %530 = vmatpush.msra.mxu0 0.0
  %531 = vmatpush.msra.mxu0 0.0
  %532 = vmatpush.msra.mxu0 0.0
  %533 = vmatpush.msra.mxu0 %v500
  %534 = vmatpush.msra.mxu0 %v499
  %535 = vmatpush.msra.mxu0 %v498
  %536 = vmatpush.msra.mxu0 %v497
  %537 = vmatpush.msra.mxu0 %v496
  %538 = vmatpush.msra.mxu0 %v495
  %539 = vmatpush.msra.mxu0 %v494
  %540 = vmatpush.msra.mxu0 %v493
  %541 = vmatpush.msra.mxu0 %v492
  %542 = vmatpush.msra.mxu0 %v491
  %543 = vmatmul.f32.gmra.mxu0 %v525
  %v544 = vpop.f32.mrf.mxu0
  %v545 = vadd.f32 0.0, %v544
  %546 = vdwg.mxu0
  %v547 = vmul.f32 %v522, %v246
  %v548 = vmul.f32 %v545, %v246
  %v549 = vmul.f32 %v547, %v547
  %v550 = vsub.f32 %v548, %v549
  %v551 = vmax.f32 %v550, 0.0
  %v552 = vadd.f32 %v551, 1e-05
  %v553 = vrsqrt.pop %v552
  %v554 = vmul.f32 %v553, %v552
  %v555 = vmul.f32 %v554, %v553
  %v556 = vmul.f32 0.5, %v555
  %v557 = vsub.f32 1.5, %v556
  %v558 = vmul.f32 %v553, %v557
  %vm559 = vweird.f32 %v552
  %vm560 = vweird.f32 %v553
  %vm561 = vmor %vm559, %vm560
  %v562 = vsel %vm561, %v553, %v558
  %v563 = vld [vmem:[%s11] sm:$0xff]
  %v565 = vsel %vm264, %v547, 0
  %567 = vmatpush.msra.mxu0 0.0
  %568 = vmatpush.msra.mxu0 0.0
  %569 = vmatpush.msra.mxu0 0.0
  %570 = vmatpush.msra.mxu0 0.0
  %571 = vmatpush.msra.mxu0 0.0
  %572 = vmatpush.msra.mxu0 0.0
  %573 = vmatpush.msra.mxu0 0.0
  %574 = vmatpush.msra.mxu0 0.0
  %575 = vmatpush.msra.mxu0 0.0
  %576 = vmatpush.msra.mxu0 0.0
  %577 = vmatpush.msra.mxu0 0.0
  %578 = vmatpush.msra.mxu0 0.0
  %579 = vmatpush.msra.mxu0 0.0
  %580 = vmatpush.msra.mxu0 0.0
  %581 = vmatpush.msra.mxu0 0.0
  %582 = vmatpush.msra.mxu0 %v563
  %583 = vmatmul.f32.gmra.mxu0 %v565
  %v584 = vpop.f32.mrf.mxu0
  %v585 = vadd.f32 0.0, %v584
  %586 = vdwg.mxu0
  %v588 = vsel %vm264, %v562, 0
  %590 = vmatpush.msra.mxu0 0.0
  %591 = vmatpush.msra.mxu0 0.0
  %592 = vmatpush.msra.mxu0 0.0
  %593 = vmatpush.msra.mxu0 0.0
  %594 = vmatpush.msra.mxu0 0.0
  %595 = vmatpush.msra.mxu0 0.0
  %596 = vmatpush.msra.mxu0 0.0
  %597 = vmatpush.msra.mxu0 0.0
  %598 = vmatpush.msra.mxu0 0.0
  %599 = vmatpush.msra.mxu0 0.0
  %600 = vmatpush.msra.mxu0 0.0
  %601 = vmatpush.msra.mxu0 0.0
  %602 = vmatpush.msra.mxu0 0.0
  %603 = vmatpush.msra.mxu0 0.0
  %604 = vmatpush.msra.mxu0 0.0
  %605 = vmatpush.msra.mxu0 %v563
  %606 = vmatmul.f32.gmra.mxu0 %v588
  %v607 = vpop.f32.mrf.mxu0
  %v608 = vadd.f32 0.0, %v607
  %609 = vdwg.mxu0
  %v610 = vperm.slane %v585, 0
  %v611 = vsub.f32 %v469, %v610
  %v612 = vsub.f32 %v470, %v610
  %v613 = vld [vmem:[%s9] sm:$0x1]
  %v614 = vmul.f32 %v608, %v613
  %v615 = vperm.slane %v614, 0
  %v616 = vmul.f32 %v611, %v615
  %v617 = vmul.f32 %v612, %v615
  %v618 = vld [vmem:[%s10] sm:$0x1]
  %v620 = vperm.slane %v618, 0
  %v622 = vadd.f32 %v616, %v620
  %v623 = vadd.f32 %v617, %v620
  %vm624 = vcmp.gt.f32.partialorder %v622, 0.0
  %vm625 = vcmp.gt.f32.partialorder %v623, 0.0
  %v626 = vmul.f32 %v622, 0.1
  %v627 = vmul.f32 %v623, 0.1
  %v628 = vsel %vm624, %v622, %v626
  %v629 = vsel %vm625, %v623, %v627
  %630 = vst.msk [vmem:[%s13] sm:$0xff] %vm163, %v628
  %631 = vst.msk [vmem:[%s13 + $0x8] sm:$0xff] %vm163, %v629
  // Predicated region
  $region54: #{down_forward.1} parent=0 // pred_check
    _
  $region55: #{down_forward.1} parent=0 // pred_check_branch
    %633 = sbr.rel (0) target = $region57
  $region56: #{down_forward.1} parent=0 // pred_region
    _
  $region57: #{down_forward.1} parent=0 // pred_fallthru
    _
  // Predicated region
  $region58: #{down_forward.1} parent=0 // pred_check
    _
  $region59: #{down_forward.1} parent=0 // pred_check_branch
    %635 = sbr.rel (0) target = $region61
  $region60: #{down_forward.1} parent=0 // pred_region
    _
  $region61: #{down_forward.1} parent=0 // pred_fallthru
    _

</llo_original>
